<compile_context>
chip_gen: v7x
topology: tpu7x:2x2x1
jax: 0.10.0
libtpu: 0.0.40
codegen_flags: <defaults>
</compile_context>

<pallas_src>
import functools

import jax
import jax.numpy as jnp
from jax.experimental import pallas as pl
from jax.experimental.pallas import tpu as pltpu


_TM_MAX = 512          # keeps >=2 parallel M blocks at M=1024 (v7x has 2 TCs)
_TN_MAX = 256          # matches the 2x256^2 MXU width on v6e/v7x
_TK_MAX = 2048         # full-K single reduction step below this
_VMEM_LIMIT = 32 * 1024 * 1024


def _round_up(x, m):
    return (x + m - 1) // m * m


def _pick_tile(total, cap, quantum):
    """Largest multiple of `quantum` <= min(total, cap) that divides `total`."""
    t = min(total, cap)
    t -= t % quantum
    t = max(t, quantum)
    while total % t:
        t -= quantum
    return t


def _apply_act(y, act):
    if act == "relu":
        return jnp.maximum(y, 0.0)
    if act == "tanh":
        return jnp.tanh(y)
    if act == "sigmoid":
        return jax.nn.sigmoid(y)
    return y


# ----------------------------------------------------------------------------
# Pallas fused matmul (+bias +activation) kernel: bf16 operands, f32 accumulate
# ----------------------------------------------------------------------------
def _mm_kernel(x_ref, w_ref, b_ref, o_ref, *, act, nsteps):
    contrib = jnp.dot(x_ref[...], w_ref[...], preferred_element_type=jnp.float32)
    if nsteps == 1:
        o_ref[...] = _apply_act(contrib + b_ref[...], act)
    else:
        k = pl.program_id(2)

        @pl.when(k == 0)
        def _():
            o_ref[...] = contrib

        @pl.when(k > 0)
        def _():
            o_ref[...] += contrib

        @pl.when(k == nsteps - 1)
        def _():
            o_ref[...] = _apply_act(o_ref[...] + b_ref[...], act)


def pallas_matmul(x, w, b, act="none"):
    """act(x @ w + b) on the MXU.  x:(M,K) -> bf16, w:(K,N) bf16, b:(1,N) f32."""
    M, K = x.shape
    Kw, N = w.shape
    assert K == Kw, (K, Kw)
    x = x.astype(jnp.bfloat16)

    # --- M tiling (pad only when M is not a multiple of 8) ---
    Mp = _round_up(M, 8)
    if Mp != M:
        x = jnp.pad(x, ((0, Mp - M), (0, 0)))
    tm = _pick_tile(Mp, _TM_MAX, 8)

    # --- N tiling (weights are stored so N is either small or 128-aligned) ---
    if N <= _TN_MAX:
        tn = N
    elif N % 128 == 0:
        tn = _pick_tile(N, _TN_MAX, 128)
    else:
        tn = N

    # --- K tiling: full-K single step when small, 128-aligned chunks otherwise
    if K > _TK_MAX and K % 128 == 0:
        tk = _pick_tile(K, _TK_MAX, 128)
    else:
        tk = K
    nsteps = K // tk

    kernel = functools.partial(_mm_kernel, act=act, nsteps=nsteps)
    out = pl.pallas_call(
        kernel,
        out_shape=jax.ShapeDtypeStruct((Mp, N), jnp.float32),
        grid_spec=pltpu.PrefetchScalarGridSpec(
            num_scalar_prefetch=0,
            grid=(Mp // tm, N // tn, nsteps),
            in_specs=[
                pl.BlockSpec((tm, tk), lambda i, j, k: (i, k)),
                pl.BlockSpec((tk, tn), lambda i, j, k: (k, j)),
                pl.BlockSpec((1, tn), lambda i, j, k: (0, j)),
            ],
            out_specs=pl.BlockSpec((tm, tn), lambda i, j, k: (i, j)),
        ),
        compiler_params=pltpu.CompilerParams(
            dimension_semantics=("parallel", "parallel", "arbitrary"),
            vmem_limit_bytes=_VMEM_LIMIT),
    )(x, w, b)
    if Mp != M:
        out = out[:M]
    return out


# ----------------------------------------------------------------------------
# Fused Mask_learning kernel: 1x1 conv -> tanh -> 1x1 conv (1 ch) -> sigmoid
# ----------------------------------------------------------------------------
def _mask_kernel(f_ref, w1_ref, b1_ref, w2_ref, b2_ref, m_ref):
    f = f_ref[...].astype(jnp.bfloat16)
    h = jnp.tanh(jnp.dot(f, w1_ref[...], preferred_element_type=jnp.float32)
                 + b1_ref[...])
    # single-output-channel 1x1 conv as a lane reduction (avoids an N=1 matmul)
    s = jnp.sum(h * w2_ref[...], axis=-1, keepdims=True)
    m_ref[...] = jax.nn.sigmoid(s + b2_ref[...])


def mask_fwd(p, f):
    n, h_, w_, c = f.shape
    M = n * h_ * w_
    f2 = f.reshape(M, c)
    Mp = _round_up(M, 8)
    if Mp != M:
        f2 = jnp.pad(f2, ((0, Mp - M), (0, 0)))
    tm = _pick_tile(Mp, _TM_MAX, 8)
    m = pl.pallas_call(
        _mask_kernel,
        out_shape=jax.ShapeDtypeStruct((Mp, 1), jnp.float32),
        grid_spec=pltpu.PrefetchScalarGridSpec(
            num_scalar_prefetch=0,
            grid=(Mp // tm,),
            in_specs=[
                pl.BlockSpec((tm, c), lambda i: (i, 0)),
                pl.BlockSpec((c, c), lambda i: (0, 0)),
                pl.BlockSpec((1, c), lambda i: (0, 0)),
                pl.BlockSpec((1, c), lambda i: (0, 0)),
                pl.BlockSpec((1, 1), lambda i: (0, 0)),
            ],
            out_specs=pl.BlockSpec((tm, 1), lambda i: (i, 0)),
        ),
        compiler_params=pltpu.CompilerParams(
            dimension_semantics=("parallel",),
            vmem_limit_bytes=_VMEM_LIMIT),
    )(f2, p["w1"], p["b1"], p["w2"], p["b2"])
    if Mp != M:
        m = m[:M]
    return m.reshape(n, h_, w_, 1)


# ----------------------------------------------------------------------------
# Fused SE channel-MLP kernel: fc1 -> relu -> fc2 -> sigmoid -> *state
# ----------------------------------------------------------------------------
def _se_mlp_kernel(x_ref, w1_ref, w2_ref, o_ref, *, state):
    x = x_ref[...].astype(jnp.bfloat16)
    h = jnp.maximum(
        jnp.dot(x, w1_ref[...], preferred_element_type=jnp.float32), 0.0)
    y = jnp.dot(h.astype(jnp.bfloat16), w2_ref[...],
                preferred_element_type=jnp.float32)
    o_ref[...] = jax.nn.sigmoid(y) * state


# ----------------------------------------------------------------------------
# Convolution = im2col (glue, bf16) + Pallas matmul (hot path)
# ----------------------------------------------------------------------------
def _im2col(x, kh, kw, stride=1, dilation=1, k_pad_to=None):
    n, h, w, c = x.shape
    ho = (h - (kh - 1) * dilation - 1) // stride + 1
    wo = (w - (kw - 1) * dilation - 1) // stride + 1
    cols = []
    for i in range(kh):
        for j in range(kw):
            r0, c0 = i * dilation, j * dilation
            cols.append(x[:, r0:r0 + (ho - 1) * stride + 1:stride,
                             c0:c0 + (wo - 1) * stride + 1:stride, :])
    k = kh * kw * c
    if k_pad_to is not None and k_pad_to > k:
        cols.append(jnp.zeros((n, ho, wo, k_pad_to - k), x.dtype))
        k = k_pad_to
    patches = jnp.concatenate(cols, axis=-1)
    return patches.reshape(n * ho * wo, k), (n, ho, wo)


def conv2d(x, p, kh, kw, *, stride=1, dilation=1, pad=0,
           pad_mode="reflect", act="none"):
    x = x.astype(jnp.bfloat16)
    if pad > 0:
        x = jnp.pad(x, ((0, 0), (pad, pad), (pad, pad), (0, 0)), mode=pad_mode)
    if kh == 1 and kw == 1 and stride == 1:
        n, h, w, c = x.shape
        patches, shape = x.reshape(n * h * w, c), (n, h, w)
    else:
        patches, shape = _im2col(x, kh, kw, stride, dilation, k_pad_to=p["kp"])
    y = pallas_matmul(patches, p["w"], p["b"], act=act)
    n, ho, wo = shape
    return y.reshape(n, ho, wo, -1)


# ----------------------------------------------------------------------------
# glue ops: bilinear resize (PyTorch semantics) and 2x2 max pool
# ----------------------------------------------------------------------------
def bilinear_resize(x, oh, ow, align_corners):
    n, h, w, c = x.shape
    if (oh, ow) == (h, w):
        return x

    def coords(out, inp):
        if align_corners:
            if out == 1:
                return jnp.zeros((out,), jnp.float32)
            return jnp.arange(out, dtype=jnp.float32) * (inp - 1) / (out - 1)
        cc = (jnp.arange(out, dtype=jnp.float32) + 0.5) * inp / out - 0.5
        return jnp.clip(cc, 0.0, inp - 1)

    ys, xs = coords(oh, h), coords(ow, w)
    y0 = jnp.floor(ys).astype(jnp.int32)
    y1 = jnp.minimum(y0 + 1, h - 1)
    wy = ys - y0
    x0 = jnp.floor(xs).astype(jnp.int32)
    x1 = jnp.minimum(x0 + 1, w - 1)
    wx = xs - x0
    rows = (x[:, y0] * (1 - wy)[None, :, None, None]
            + x[:, y1] * wy[None, :, None, None])
    out = (rows[:, :, x0] * (1 - wx)[None, None, :, None]
           + rows[:, :, x1] * wx[None, None, :, None])
    return out


def maxpool2x2(x):
    n, h, w, c = x.shape
    hc, wc = (h // 2) * 2, (w // 2) * 2
    x = x[:, :hc, :wc, :]
    return x.reshape(n, hc // 2, 2, wc // 2, 2, c).max(axis=(2, 4))


# ----------------------------------------------------------------------------
# parameter initialization (deterministic, synthetic, pre-shaped for Pallas)
# ----------------------------------------------------------------------------
class KeyGen:
    def __init__(self, seed=0):
        self._key = jax.random.PRNGKey(seed)

    def __call__(self):
        self._key, sub = jax.random.split(self._key)
        return sub


def conv_init(kg, kh, kw, cin, cout, bias=True):
    k = kh * kw * cin
    kp = k if (kh == 1 and kw == 1) else _round_up(k, 128)
    std = (2.0 / k) ** 0.5
    w = jax.random.normal(kg(), (k, cout), jnp.float32) * std
    if kp != k:
        w = jnp.pad(w, ((0, kp - k), (0, 0)))
    if bias:
        b = jax.random.normal(kg(), (1, cout), jnp.float32) * 0.01
    else:
        b = jnp.zeros((1, cout), jnp.float32)
    return {"w": w.astype(jnp.bfloat16), "b": b, "kp": kp}


# ---------------- Mask_learning ----------------
def mask_init(kg, c):
    return {
        "w1": (jax.random.normal(kg(), (c, c), jnp.float32)
               * (2.0 / c) ** 0.5).astype(jnp.bfloat16),
        "b1": jax.random.normal(kg(), (1, c), jnp.float32) * 0.01,
        "w2": jax.random.normal(kg(), (1, c), jnp.float32) * (2.0 / c) ** 0.5,
        "b2": jax.random.normal(kg(), (1, 1), jnp.float32) * 0.01,
    }


# ---------------- Seperation_module (and _B variant) ----------------
def sep_init(kg, in_c, out_c, down=False):
    p = {"a": conv_init(kg, 3, 3, in_c, in_c, bias=False),
         "b": conv_init(kg, 3, 3, in_c, in_c, bias=False),
         "mask": mask_init(kg, in_c)}
    if down:
        p["down"] = conv_init(kg, 3, 3, out_c, out_c * 2, bias=False)
    return p


def sep_fwd(p, B, dilation=1):
    f = conv2d(B, p["a"], 3, 3, dilation=dilation, pad=dilation, act="relu")
    f = conv2d(f, p["b"], 3, 3, dilation=dilation, pad=dilation, act="relu")
    m = mask_fwd(p["mask"], f)
    out = m * f + B
    if "down" in p:
        od = conv2d(out, p["down"], 3, 3, stride=2, pad=1, act="relu")
        return od, m, out
    return out, m


# ---------------- UpSample ----------------
def up_init(kg, skip, out):
    return {"c1": conv_init(kg, 3, 3, skip, out),
            "c2": conv_init(kg, 3, 3, out, out)}


def up_fwd(p, x, cat):
    up = bilinear_resize(x, cat.shape[1], cat.shape[2], align_corners=True)
    h = jnp.concatenate([up.astype(jnp.bfloat16), cat.astype(jnp.bfloat16)],
                        axis=-1)
    h = conv2d(h, p["c1"], 3, 3, pad=1, act="relu")
    return conv2d(h, p["c2"], 3, 3, pad=1, act="relu")


# ---------------- OutConv ----------------
def outconv_init(kg):
    return {"c1": conv_init(kg, 3, 3, 64, 64), "c2": conv_init(kg, 1, 1, 64, 3)}


def outconv_fwd(p, x):
    h = conv2d(x, p["c1"], 3, 3, pad=1, act="relu")
    return conv2d(h, p["c2"], 1, 1)


# ---------------- Transit_mask ----------------
def transit_init(kg):
    return {"c1": conv_init(kg, 3, 3, 64, 64),
            "c2": conv_init(kg, 3, 3, 64, 64),
            "mask": mask_init(kg, 64)}


def transit_fwd(p, x):
    h = conv2d(x, p["c1"], 3, 3, pad=1, act="relu")
    out = conv2d(h, p["c2"], 3, 3, pad=1, act="relu")
    m = mask_fwd(p["mask"], out)
    return out * m, out * (1.0 - m), m, 1.0 - m


# ---------------- SELayer ----------------
def se_init(kg, c=64, r=16):
    hidden = c // r
    dw = jax.random.normal(kg(), (5, 5, c), jnp.float32) * (2.0 / 25) ** 0.5
    fc1 = jax.random.normal(kg(), (c, hidden), jnp.float32) * (2.0 / c) ** 0.5
    fc2 = jax.random.normal(kg(), (hidden, c), jnp.float32) * (2.0 / hidden) ** 0.5
    # hidden dim zero-padded to 128 lanes: mathematically exact, aligned layout.
    fc1p = jnp.zeros((c, 128), jnp.float32).at[:, :hidden].set(fc1)
    fc2p = jnp.zeros((128, c), jnp.float32).at[:hidden, :].set(fc2)
    return {"dw": dw,
            "mask_w": jax.random.normal(kg(), (c,), jnp.float32) * 0.5,
            "fc1_w": fc1p.astype(jnp.bfloat16),
            "fc2_w": fc2p.astype(jnp.bfloat16)}


def se_fwd(p, x, state):
    n, h, w, c = x.shape
    xpad = jnp.pad(x, ((0, 0), (1, 1), (1, 1), (0, 0)), mode="reflect")
    # 5x5 / stride-4 depthwise conv + relu as 25 shifted multiply-adds
    # (tiny, VPU-trivial; avoids the old 98%-zero block-diagonal dense matmul).
    ho = (h + 2 - 5) // 4 + 1
    wo = (w + 2 - 5) // 4 + 1
    acc = jnp.zeros((n, ho, wo, c), jnp.float32)
    for ti in range(5):
        for tj in range(5):
            sl = xpad[:, ti:ti + (ho - 1) * 4 + 1:4,
                         tj:tj + (wo - 1) * 4 + 1:4, :].astype(jnp.float32)
            acc = acc + sl * p["dw"][ti, tj]
    feat = jnp.maximum(acc, 0.0)
    # grouped 1x1 conv (groups=C, no bias) == per-channel scale, then sigmoid
    m = jax.nn.sigmoid(feat * p["mask_w"])
    feat = feat * m
    mean = jnp.mean(feat, axis=(1, 2))                       # (N, C)
    np_ = _round_up(n, 8)
    mean_p = jnp.pad(mean, ((0, np_ - n), (0, 0))) if np_ != n else mean
    weight = pl.pallas_call(
        functools.partial(_se_mlp_kernel, state=state),
        out_shape=jax.ShapeDtypeStruct((np_, c), jnp.float32),
        grid_spec=pltpu.PrefetchScalarGridSpec(
            num_scalar_prefetch=0,
            grid=(1,),
            in_specs=[pl.BlockSpec((np_, c), lambda i: (0, 0)),
                      pl.BlockSpec((c, 128), lambda i: (0, 0)),
                      pl.BlockSpec((128, c), lambda i: (0, 0))],
            out_specs=pl.BlockSpec((np_, c), lambda i: (0, 0)),
        ),
        compiler_params=pltpu.CompilerParams(
            dimension_semantics=("arbitrary",),
            vmem_limit_bytes=_VMEM_LIMIT),
    )(mean_p, p["fc1_w"], p["fc2_w"])[:n]
    return x * weight[:, None, None, :]


# ---------------- Seperation-module chain (Model main path / R_Branch) -------
def branch_init(kg):
    return {"s_m0": sep_init(kg, 64, 64, down=True),
            "s_m1": sep_init(kg, 128, 128, down=True),
            "s_m2": sep_init(kg, 256, 256), "s_m3": sep_init(kg, 256, 256),
            "s_m4": sep_init(kg, 256, 256), "s_m5": sep_init(kg, 256, 256),
            "s_m21": sep_init(kg, 256, 256), "s_m31": sep_init(kg, 256, 256),
            "s_m41": sep_init(kg, 256, 256), "s_m51": sep_init(kg, 256, 256),
            "s_m6": sep_init(kg, 128, 128), "s_m7": sep_init(kg, 64, 64),
            "up1": up_init(kg, 256 + 128, 128),
            "up2": up_init(kg, 128 + 64, 64)}


def branch_fwd(p, feat):
    o0, m0, c0 = sep_fwd(p["s_m0"], feat)
    o1, m1, c1 = sep_fwd(p["s_m1"], o0)
    o2, m2 = sep_fwd(p["s_m2"], o1)
    o3, m3 = sep_fwd(p["s_m3"], o2)
    o4, m4 = sep_fwd(p["s_m4"], o3)
    o5, m5 = sep_fwd(p["s_m5"], o4)
    o6, m6 = sep_fwd(p["s_m21"], o5)
    o7, m7 = sep_fwd(p["s_m31"], o6)
    o8, m8 = sep_fwd(p["s_m41"], o7)
    o5, m5 = sep_fwd(p["s_m51"], o8)          # overwrites mask5 as in reference
    o5 = up_fwd(p["up1"], o5, c1)
    o6, m6 = sep_fwd(p["s_m6"], o5)           # overwrites mask6
    o6 = up_fwd(p["up2"], o6, c0)
    o7, m7 = sep_fwd(p["s_m7"], o6)           # overwrites mask7
    return o7, [m0, m1, m2, m3, m4, m5, m6, m7]


# ---------------- Refined ----------------
_REFINE_DIL = (1, 2, 4, 8, 16, 1)


def refined_init(kg):
    return {"conv": conv_init(kg, 3, 3, 192, 64),
            "sms": [sep_init(kg, 64, 64) for _ in _REFINE_DIL],
            "oc1": conv_init(kg, 1, 1, 64, 64),
            "oc2": conv_init(kg, 1, 1, 64, 3)}


def refined_fwd(p, x):
    h = conv2d(x, p["conv"], 3, 3, pad=1, act="relu")
    masks = []
    for pp, d in zip(p["sms"], _REFINE_DIL):
        h, m = sep_fwd(pp, h, dilation=d)
        masks.append(m)
    out = conv2d(h, p["oc1"], 1, 1, act="relu")
    out = conv2d(out, p["oc2"], 1, 1)
    return out, masks


# ---------------- hyper (VGG19 hypercolumn head) ----------------
_VGG_CFG = [(3, 64, False),
            (64, 64, False), (64, 128, True),
            (128, 128, False), (128, 256, True),
            (256, 256, False), (256, 256, False), (256, 256, False),
            (256, 512, True),
            (512, 512, False), (512, 512, False), (512, 512, False),
            (512, 512, True)]
_VGG_OUT = (0, 2, 4, 8, 12)   # relu1_1, relu2_1, relu3_1, relu4_1, relu5_1


def vgg_init(kg):
    return [conv_init(kg, 3, 3, cin, cout) for cin, cout, _ in _VGG_CFG]


def vgg_fwd(p, x):
    feats, h = [], x
    for i, ((_cin, _cout, pool), pp) in enumerate(zip(_VGG_CFG, p)):
        if pool:
            h = maxpool2x2(h)
        h = conv2d(h, pp, 3, 3, pad=1, pad_mode="constant", act="relu")
        if i in _VGG_OUT:
            feats.append(h)
    return feats


def hyper_init(kg):
    return {"vgg": vgg_init(kg),
            "c1": conv_init(kg, 3, 3, 1475, 64),
            "c2": conv_init(kg, 3, 3, 64, 64)}


def hyper_fwd(p, x):
    feats = vgg_fwd(p["vgg"], x)
    H, W = x.shape[1], x.shape[2]
    ups = [bilinear_resize(f, H, W, align_corners=False).astype(jnp.bfloat16)
           for f in feats]
    inp = jnp.concatenate([x.astype(jnp.bfloat16)] + ups, axis=-1)  # 1475 ch
    h = conv2d(inp, p["c1"], 3, 3, pad=1, act="relu")
    return conv2d(h, p["c2"], 3, 3, pad=1, act="relu")


# ----------------------------------------------------------------------------
# full Model
# ----------------------------------------------------------------------------
def model_init(seed=0):
    kg = KeyGen(seed)
    return {"hyper": hyper_init(kg),
            "sep": transit_init(kg),
            "main": branch_init(kg),
            "oc_B": outconv_init(kg),
            "oc_R": outconv_init(kg),
            "rbranch": branch_init(kg),
            "se": se_init(kg),
            "refine": refined_init(kg)}


def model_fwd(params, I_nchw):
    x = jnp.transpose(I_nchw, (0, 2, 3, 1)).astype(jnp.float32)   # -> NHWC
    inp = hyper_fwd(params["hyper"], x)
    feat_B, feat_R, mask_B, _mask_R = transit_fwd(params["sep"], inp)

    outB7, masks = branch_fwd(params["main"], feat_B)
    B_coarse = outconv_fwd(params["oc_B"], outB7)

    out_R, _ = branch_fwd(params["rbranch"], feat_R)
    R = outconv_fwd(params["oc_R"], out_R)

    feat_fromR = hyper_fwd(params["hyper"], R)
    feat_BC = hyper_fwd(params["hyper"], B_coarse)
    positive = se_fwd(params["se"], feat_B, 1.0)
    negative = se_fwd(params["se"], feat_fromR, -1.0)

    feat2refine = jnp.concatenate([feat_BC.astype(jnp.bfloat16),
                                   positive.astype(jnp.bfloat16),
                                   negative.astype(jnp.bfloat16)], axis=-1)
    Bf, mask_fine = refined_fwd(params["refine"], feat2refine)
    B = Bf + x

    to_nchw = lambda t: jnp.transpose(t, (0, 3, 1, 2))
    mask = [to_nchw(m) for m in masks + mask_fine]
    return (to_nchw(R), to_nchw(B_coarse), to_nchw(B), to_nchw(mask_B),
            mask, mask)


if __name__ == "__main__":
    params = model_init(0)
    I = jax.random.normal(jax.random.PRNGKey(0), (1, 3, 32, 32), jnp.float32)
    out = model_fwd(params, I)
    jax.block_until_ready(out)
    R, B_coarse, B, mask_B, mask, _ = out
    assert R.shape == (1, 3, 32, 32) and B.shape == (1, 3, 32, 32)
    assert B_coarse.shape == (1, 3, 32, 32) and mask_B.shape == (1, 1, 32, 32)
    assert len(mask) == 14
    print("KERNEL_OK")
</pallas_src>

<mosaic_0001>
module attributes {stable_mosaic.version = 11 : i64} {
  func.func @_mm_kernel(%arg0: i32, %arg1: i32, %arg2: i32, %arg3: memref<512x128xbf16, #tpu.memory_space<vmem>>, %arg4: memref<128x64xbf16, #tpu.memory_space<vmem>>, %arg5: memref<1x64xf32, #tpu.memory_space<vmem>>, %arg6: memref<512x64xf32, #tpu.memory_space<vmem>>) attributes {dimension_semantics = [#tpu.dimension_semantics<parallel>, #tpu.dimension_semantics<parallel>, #tpu.dimension_semantics<arbitrary>], iteration_bounds = array<i64: 2, 1, 1>, scalar_prefetch = 0 : i64, scratch_operands = 0 : i64, tpu.core_type = #tpu.core_type<tc>, window_params = [{transform_indices = @transform_0, window_bounds = array<i64: 512, 128>}, {transform_indices = @transform_1, window_bounds = array<i64: 128, 64>}, {transform_indices = @transform_2, window_bounds = array<i64: 1, 64>}, {transform_indices = @transform_3, window_bounds = array<i64: 512, 64>}]} {
    %c0 = arith.constant 0 : index
    %c0_0 = arith.constant 0 : index
    %0 = vector.load %arg3[%c0, %c0_0] : memref<512x128xbf16, #tpu.memory_space<vmem>>, vector<512x128xbf16>
    %c0_1 = arith.constant 0 : index
    %c0_2 = arith.constant 0 : index
    %1 = vector.load %arg4[%c0_1, %c0_2] : memref<128x64xbf16, #tpu.memory_space<vmem>>, vector<128x64xbf16>
    %cst = arith.constant dense<0.000000e+00> : vector<512x64xf32>
    %2 = tpu.matmul %0, %1, %cst {dimension_numbers = #tpu.dot_dimension_numbers<[1], [0], [0], [1], [0, 0, 1, 1], [], []>} : vector<512x128xbf16>, vector<128x64xbf16>, vector<512x64xf32> -> vector<512x64xf32>
    %c0_3 = arith.constant 0 : index
    %c0_4 = arith.constant 0 : index
    %3 = vector.load %arg5[%c0_3, %c0_4] : memref<1x64xf32, #tpu.memory_space<vmem>>, vector<1x64xf32>
    %4 = vector.broadcast %3 : vector<1x64xf32> to vector<512x64xf32>
    %5 = arith.addf %2, %4 : vector<512x64xf32>
    %cst_5 = arith.constant 0.000000e+00 : f32
    %6 = vector.broadcast %cst_5 : f32 to vector<512x64xf32>
    %7 = arith.maximumf %5, %6 : vector<512x64xf32>
    %c0_6 = arith.constant 0 : index
    %c0_7 = arith.constant 0 : index
    %8 = vector.load %arg6[%c0_6, %c0_7] : memref<512x64xf32, #tpu.memory_space<vmem>>, vector<512x64xf32>
    tpu.vector_store %arg6[%c0_6, %c0_7], %7 {strides = array<i32>} : memref<512x64xf32, #tpu.memory_space<vmem>>, vector<512x64xf32>,
    return
  }
  func.func @transform_0(%arg0: i32, %arg1: i32, %arg2: i32) -> (i32, i32) {
    %c0_i32 = arith.constant 0 : i32
    return %arg0, %arg2 : i32, i32
  }
  func.func @transform_1(%arg0: i32, %arg1: i32, %arg2: i32) -> (i32, i32) {
    %c0_i32 = arith.constant 0 : i32
    return %arg2, %arg1 : i32, i32
  }
  func.func @transform_2(%arg0: i32, %arg1: i32, %arg2: i32) -> (i32, i32) {
    %c0_i32 = arith.constant 0 : i32
    %c0_i32_0 = arith.constant 0 : i32
    return %c0_i32, %arg1 : i32, i32
  }
  func.func @transform_3(%arg0: i32, %arg1: i32, %arg2: i32) -> (i32, i32) {
    %c0_i32 = arith.constant 0 : i32
    return %arg0, %arg1 : i32, i32
  }
}

</mosaic_0001>

<llo_original>
// kernel: tpu_custom_call.1
$region0: #{tpu_custom_call.1}
  #allocation0 [shape = 'u32[]', space=smem, size = 0x4, offset = 0x4, fixed_abs, tag = 'smem constant byte address 0x4 - core index']
  #allocation1 [shape = 'u32[144,128]{1,0:T(1,128)}', space=vmem, size = 0x12000, scoped, tag = 'internal scratch']
  %s0 = inlined_call_operand.hbm [shape: bf16[1024,128], index: 0, kind: input, shape index: {}]
  %s1 = inlined_call_operand.vmem [shape: bf16[128,64], index: 1, kind: input, shape index: {}]
  %s2 = inlined_call_operand.vmem [shape: f32[1,64], index: 2, kind: input, shape index: {}]
  %s3 = inlined_call_operand.vmem [shape: f32[1024,64], index: 3, kind: output, shape index: {}]
  %s4 = sld [smem:[#allocation0]]
  $region49: #{tpu_custom_call.1} parent=0
    _
  %s6 = ssub.s32 1, %s4
  %s7 = scalar_select 0, %s6, %s4
  $region1: #{tpu_custom_call.1} parent=0
    #allocation2 [shape = 'u8[262144]{0}', space=vmem, size = 0x40000, scoped, tag = 'input window, operand 0']
    #allocation3 [shape = 's32[2]{0}', space=sflag, size = 0x8, scoped, tag = 'scoped memory for tpu_custom_call.1']
    %8 = vsyncpa [#allocation3], 0
    %s9 = scalar_lea.sflag [#allocation3], 1
    %10 = vsyncpa %s9, 0
    loop: start=0, step=1, limit=4
    $region2: #{tpu_custom_call.1} parent=1 // loop_pre_header
      _
    $region3: #{tpu_custom_call.1} parent=1 // loop_header
      %s12 = sphi 0, %s16
      %p13 = scmp.ge.s32.totalorder %s12, 4
      %s19 = sphi 0, %s38
      %s20 = sphi 0, %s34
      %s21 = sphi 0, %s30
      %s22 = sphi 0, %s19
      %s23 = sphi 0, %s20
      %s24 = sphi 0, %s21
      %s25 = sphi 0, %s22
      %s26 = sphi 0, %s23
      %s27 = sphi 0, %s24
      %s43 = sphi 0, %s45
      %s46 = sphi 0, %s43
      %s47 = sphi 0, %s46
      %s63 = sphi 0, %s47
      %s71 = sphi 0, %s73
      %s74 = sphi 0, %s71
      %s75 = sphi 0, %s74
      %s91 = sphi 0, %s75
      %s97 = sphi 0, %s99
      %s100 = sphi 0, %s97
      %s101 = sphi 0, %s100
      %s117 = sphi 0, %s101
      %s125 = sphi 0, %s127
      %s128 = sphi 0, %s125
      %s129 = sphi 0, %s128
      %s145 = sphi 0, %s129
    $region4: #{tpu_custom_call.1} parent=1 // loop_header_branch
      %15 = sbr.rel (%p13) target = $region8
    $region5: #{tpu_custom_call.1} parent=1 // loop_body
      %s17 = ssub.s32 %s12, 1
      %s18 = ssub.s32 %s12, 2
      %s28 = sadd.s32 1, %s21
      %p29 = scmp.ge.s32.totalorder %s28, 1
      %s30 = scalar_select %p29, 0, %s28
      %s31 = sadd.s32 1, %s20
      %s32 = scalar_select %p29, %s31, %s20
      %p33 = scmp.ge.s32.totalorder %s32, 1
      %s34 = scalar_select %p33, 0, %s32
      %s35 = sadd.s32 1, %s19
      %s36 = scalar_select %p33, %s35, %s19
      %p37 = scmp.ge.s32.totalorder %s36, 2
      %s38 = scalar_select %p37, 0, %s36
      %s39 = ssub.s32 %s19, %s38
      %s40 = ssub.s32 %s21, %s30
      %s41 = sor.u32 %s39, %s40
      %p42 = scmp.eq.s32.totalorder %s41, 0
      %s44 = sadd.s32 %s43, 1
      %s45 = scalar_select %p42, %s43, %s44
      %p48 = pneg %p42
      %p49 = scmp.eq.s32.totalorder %s12, 1
      %p50 = por %p48, %p49
      %p51 = scmp.ne.s32.totalorder %s43, %s46
      %p52 = scmp.eq.s32.totalorder %s12, 0
      %p53 = por %p51, %p52
      %p54 = scmp.ne.s32.totalorder %s43, %s46
      %p55 = scmp.eq.s32.totalorder %s17, 1
      %p56 = por %p54, %p55
      %p57 = scmp.ne.s32.totalorder %s46, %s47
      %p58 = scmp.eq.s32.totalorder %s17, 0
      %p59 = por %p57, %p58
      %p60 = scmp.ne.s32.totalorder %s46, %s47
      %p61 = scmp.eq.s32.totalorder %s18, 1
      %p62 = por %p60, %p61
      %p64 = scmp.ne.s32.totalorder %s47, %s63
      %p65 = scmp.eq.s32.totalorder %s18, 0
      %p66 = por %p64, %p65
      %s67 = ssub.s32 %s21, %s30
      %s68 = ssub.s32 %s20, %s34
      %s69 = sor.u32 %s67, %s68
      %p70 = scmp.eq.s32.totalorder %s69, 0
      %s72 = sadd.s32 %s71, 1
      %s73 = scalar_select %p70, %s71, %s72
      %p76 = pneg %p70
      %p77 = scmp.eq.s32.totalorder %s12, 1
      %p78 = por %p76, %p77
      %p79 = scmp.ne.s32.totalorder %s71, %s74
      %p80 = scmp.eq.s32.totalorder %s12, 0
      %p81 = por %p79, %p80
      %p82 = scmp.ne.s32.totalorder %s71, %s74
      %p83 = scmp.eq.s32.totalorder %s17, 1
      %p84 = por %p82, %p83
      %p85 = scmp.ne.s32.totalorder %s74, %s75
      %p86 = scmp.eq.s32.totalorder %s17, 0
      %p87 = por %p85, %p86
      %p88 = scmp.ne.s32.totalorder %s74, %s75
      %p89 = scmp.eq.s32.totalorder %s18, 1
      %p90 = por %p88, %p89
      %p92 = scmp.ne.s32.totalorder %s75, %s91
      %p93 = scmp.eq.s32.totalorder %s18, 0
      %p94 = por %p92, %p93
      %s95 = ssub.s32 %s20, %s34
      %p96 = scmp.eq.s32.totalorder %s95, 0
      %s98 = sadd.s32 %s97, 1
      %s99 = scalar_select %p96, %s97, %s98
      %p102 = pneg %p96
      %p103 = scmp.eq.s32.totalorder %s12, 1
      %p104 = por %p102, %p103
      %p105 = scmp.ne.s32.totalorder %s97, %s100
      %p106 = scmp.eq.s32.totalorder %s12, 0
      %p107 = por %p105, %p106
      %p108 = scmp.ne.s32.totalorder %s97, %s100
      %p109 = scmp.eq.s32.totalorder %s17, 1
      %p110 = por %p108, %p109
      %p111 = scmp.ne.s32.totalorder %s100, %s101
      %p112 = scmp.eq.s32.totalorder %s17, 0
      %p113 = por %p111, %p112
      %p114 = scmp.ne.s32.totalorder %s100, %s101
      %p115 = scmp.eq.s32.totalorder %s18, 1
      %p116 = por %p114, %p115
      %p118 = scmp.ne.s32.totalorder %s101, %s117
      %p119 = scmp.eq.s32.totalorder %s18, 0
      %p120 = por %p118, %p119
      %s121 = ssub.s32 %s19, %s38
      %s122 = ssub.s32 %s20, %s34
      %s123 = sor.u32 %s121, %s122
      %p124 = scmp.eq.s32.totalorder %s123, 0
      %s126 = sadd.s32 %s125, 1
      %s127 = scalar_select %p124, %s125, %s126
      %p130 = pneg %p124
      %p131 = scmp.eq.s32.totalorder %s12, 1
      %p132 = por %p130, %p131
      %p133 = scmp.ne.s32.totalorder %s125, %s128
      %p134 = scmp.eq.s32.totalorder %s12, 0
      %p135 = por %p133, %p134
      %p136 = scmp.ne.s32.totalorder %s125, %s128
      %p137 = scmp.eq.s32.totalorder %s17, 1
      %p138 = por %p136, %p137
      %p139 = scmp.ne.s32.totalorder %s128, %s129
      %p140 = scmp.eq.s32.totalorder %s17, 0
      %p141 = por %p139, %p140
      %p142 = scmp.ne.s32.totalorder %s128, %s129
      %p143 = scmp.eq.s32.totalorder %s18, 1
      %p144 = por %p142, %p143
      %p146 = scmp.ne.s32.totalorder %s129, %s145
      %p147 = scmp.eq.s32.totalorder %s18, 0
      %p148 = por %p146, %p147
      %p149 = scmp.le.s32.totalorder 1, %s12
      %p150 = scmp.lt.s32.totalorder %s12, 3
      %p151 = pnand %p149, %p150
      %p152 = pneg %p151
      // Predicated region
      $region9: #{tpu_custom_call.1} parent=5 // pred_check
        _
      $region10: #{tpu_custom_call.1} parent=5 // pred_check_branch
        %154 = sbr.rel (%p151) target = $region12
      $region11: #{tpu_custom_call.1} parent=5 // pred_region
        %s155 = ssub.s32 %s12, 1
        // Predicated region
        $region13: #{tpu_custom_call.1} parent=11 // pred_check
          %p156 = pneg %p87
        $region14: #{tpu_custom_call.1} parent=11 // pred_check_branch
          %158 = sbr.rel (%p156) target = $region16
        $region15: #{tpu_custom_call.1} parent=11 // pred_region
          %s159 = smul.u32 16, %s24
          %p160 = scmp.lt.s32.totalorder %s159, 15
          %s161 = scalar_select %p160, %s159, 15
          %p162 = scmp.lt.s32.totalorder %s23, 0
          %s163 = scalar_select %p162, %s23, 0
          %s164 = sadd.s32 %s163, %s161
          %s165 = smul.addr %s164, 4
          %s166 = scalar_lea.vmem %s1, %s165
          %s167 = smul.u32 16, %s24
        $region16: #{tpu_custom_call.1} parent=11 // pred_fallthru
          _
        // Predicated region
        $region17: #{tpu_custom_call.1} parent=11 // pred_check
          %p168 = pneg %p113
        $region18: #{tpu_custom_call.1} parent=11 // pred_check_branch
          %170 = sbr.rel (%p168) target = $region20
        $region19: #{tpu_custom_call.1} parent=11 // pred_region
          %p171 = scmp.lt.s32.totalorder %s23, 0
          %s172 = scalar_select %p171, %s23, 0
          %s173 = scalar_lea.vmem %s2, %s172
        $region20: #{tpu_custom_call.1} parent=11 // pred_fallthru
          _
      $region12: #{tpu_custom_call.1} parent=5 // pred_fallthru
        _
      %p174 = scmp.lt.s32.totalorder %s12, 2
      // Predicated region
      $region21: #{tpu_custom_call.1} parent=5 // pred_check
        %p175 = pneg %p174
      $region22: #{tpu_custom_call.1} parent=5 // pred_check_branch
        %177 = sbr.rel (%p175) target = $region24
      $region23: #{tpu_custom_call.1} parent=5 // pred_region
        // Predicated region
        $region25: #{tpu_custom_call.1} parent=23 // pred_check
          %p178 = pneg %p53
        $region26: #{tpu_custom_call.1} parent=23 // pred_check_branch
          %180 = sbr.rel (%p178) target = $region28
        $region27: #{tpu_custom_call.1} parent=23 // pred_region
          %s181 = sand.u32 %s43, 1
          %s182 = scalar_lea.sflag [#allocation3], %s181
          %s183 = sand.u32 %s43, 1
          %s184 = smul.addr %s183, 256
          %s185 = scalar_lea.vmem [#allocation2], %s184
          %s186 = smul.u32 64, %s19
          %s188 = ssub.s32 4096, 4096
          %189 = vsyncadd %s182, %s188
          %s190 = sadd.s32 %s21, %s186
          %s191 = smul.addr %s190, 64
          %s192 = scalar_lea.hbm %s0, %s191
          %s193 = sshll.u32 %s185, 4
          %s194 = int_to_ptr.vmem [resolvable:$true] %s193
          %199 = dma.hbm_to_vmem [thread:$0]  %s192, 4096, %s194, %s182, 64, 64, 4
        $region28: #{tpu_custom_call.1} parent=23 // pred_fallthru
          _
      $region24: #{tpu_custom_call.1} parent=5 // pred_fallthru
        _
      %p200 = scmp.le.s32.totalorder 1, %s12
      %p201 = scmp.lt.s32.totalorder %s12, 3
      %p202 = pnand %p200, %p201
      %p203 = pneg %p202
      // Predicated region
      $region29: #{tpu_custom_call.1} parent=5 // pred_check
        _
      $region30: #{tpu_custom_call.1} parent=5 // pred_check_branch
        %205 = sbr.rel (%p202) target = $region32
      $region31: #{tpu_custom_call.1} parent=5 // pred_region
        %s206 = ssub.s32 %s12, 1
        %s207 = sand.u32 %s46, 1
        %s208 = scalar_lea.sflag [#allocation3], %s207
        %s209 = sand.u32 %s46, 1
        %s210 = smul.addr %s209, 256
        %s211 = scalar_lea.vmem [#allocation2], %s210
        // Predicated region
        $region33: #{tpu_custom_call.1} parent=31 // pred_check
          %p212 = pneg %p59
        $region34: #{tpu_custom_call.1} parent=31 // pred_check_branch
          %214 = sbr.rel (%p212) target = $region36
        $region35: #{tpu_custom_call.1} parent=31 // pred_region
          %215 = dma.done %s208, 4096
        $region36: #{tpu_custom_call.1} parent=31 // pred_fallthru
          _
        %s216 = sand.u32 %s46, 1
        %s217 = scalar_lea.sflag [#allocation3], %s216
        %s218 = sand.u32 %s46, 1
        %s219 = smul.addr %s218, 256
        %s220 = scalar_lea.vmem [#allocation2], %s219
        %p221 = pneg %p59
        %p222 = pneg %p56
        %s223 = smul.u32 16, %s24
        %p224 = scmp.lt.s32.totalorder %s223, 15
        %s225 = scalar_select %p224, %s223, 15
        %p226 = scmp.lt.s32.totalorder %s23, 0
        %s227 = scalar_select %p226, %s23, 0
        %s228 = sadd.s32 %s227, %s225
        %s229 = smul.addr %s228, 4
        %s230 = scalar_lea.vmem %s1, %s229
        %p231 = pneg %p87
        %p232 = pneg %p84
        %p233 = scmp.lt.s32.totalorder %s23, 0
        %s234 = scalar_select %p233, %s23, 0
        %s235 = scalar_lea.vmem %s2, %s234
        %p236 = pneg %p113
        %p237 = pneg %p110
        %p238 = pneg %p141
        %p239 = pneg %p138
        %s240 = smul.u32 64, %s22
        %p241 = scmp.lt.s32.totalorder %s240, 127
        %s242 = scalar_select %p241, %s240, 127
        %p243 = scmp.lt.s32.totalorder %s23, 0
        %s244 = scalar_select %p243, %s23, 0
        %s245 = sadd.s32 %s244, %s242
        %s246 = smul.addr %s245, 8
        %s247 = scalar_lea.vmem %s3, %s246
        %s248 = smul.u32 64, %s22
        %s249 = smul.u32 16, %s24
        %p250 = scmp.lt.s32.totalorder %s249, 15
        %s251 = scalar_select %p250, %s249, 15
        %p252 = scmp.lt.s32.totalorder %s23, 0
        %s253 = scalar_select %p252, %s23, 0
        %s254 = sadd.s32 %s253, %s251
        %s255 = smul.addr %s254, 4
        %s256 = scalar_lea.vmem %s1, %s255
        %s257 = smul.u32 16, %s24
        %p258 = scmp.lt.s32.totalorder %s23, 0
        %s259 = scalar_select %p258, %s23, 0
        %s260 = scalar_lea.vmem %s2, %s259
        %s261 = smul.u32 64, %s22
        %p262 = scmp.lt.s32.totalorder %s261, 127
        %s263 = scalar_select %p262, %s261, 127
        %p264 = scmp.lt.s32.totalorder %s23, 0
        %s265 = scalar_select %p264, %s23, 0
        %s266 = sadd.s32 %s265, %s263
        %s267 = smul.addr %s266, 8
        %s268 = scalar_lea.vmem %s3, %s267
        %s269 = smul.u32 64, %s22
        %v271 = vld [vmem:[%s211] sm:$0xf]
        %v272 = vld [vmem:[%s211 + $0x4] sm:$0xf]
        %v273 = vld [vmem:[%s211 + $0x8] sm:$0xf]
        %v274 = vld [vmem:[%s211 + $0xc] sm:$0xf]
        %v275 = vld [vmem:[%s211 + $0x10] sm:$0xf]
        %v276 = vld [vmem:[%s211 + $0x14] sm:$0xf]
        %v277 = vld [vmem:[%s211 + $0x18] sm:$0xf]
        %v278 = vld [vmem:[%s211 + $0x1c] sm:$0xf]
        %v279 = vld [vmem:[%s211 + $0x20] sm:$0xf]
        %v280 = vld [vmem:[%s211 + $0x24] sm:$0xf]
        %v281 = vld [vmem:[%s211 + $0x28] sm:$0xf]
        %v282 = vld [vmem:[%s211 + $0x2c] sm:$0xf]
        %v283 = vld [vmem:[%s211 + $0x30] sm:$0xf]
        %v284 = vld [vmem:[%s211 + $0x34] sm:$0xf]
        %v285 = vld [vmem:[%s211 + $0x38] sm:$0xf]
        %v286 = vld [vmem:[%s211 + $0x3c] sm:$0xf]
        %v287 = vld [vmem:[%s211 + $0x40] sm:$0xf]
        %v288 = vld [vmem:[%s211 + $0x44] sm:$0xf]
        %v289 = vld [vmem:[%s211 + $0x48] sm:$0xf]
        %v290 = vld [vmem:[%s211 + $0x4c] sm:$0xf]
        %v291 = vld [vmem:[%s211 + $0x50] sm:$0xf]
        %v292 = vld [vmem:[%s211 + $0x54] sm:$0xf]
        %v293 = vld [vmem:[%s211 + $0x58] sm:$0xf]
        %v294 = vld [vmem:[%s211 + $0x5c] sm:$0xf]
        %v295 = vld [vmem:[%s211 + $0x60] sm:$0xf]
        %v296 = vld [vmem:[%s211 + $0x64] sm:$0xf]
        %v297 = vld [vmem:[%s211 + $0x68] sm:$0xf]
        %v298 = vld [vmem:[%s211 + $0x6c] sm:$0xf]
        %v299 = vld [vmem:[%s211 + $0x70] sm:$0xf]
        %v300 = vld [vmem:[%s211 + $0x74] sm:$0xf]
        %v301 = vld [vmem:[%s211 + $0x78] sm:$0xf]
        %v302 = vld [vmem:[%s211 + $0x7c] sm:$0xf]
        %v303 = vld [vmem:[%s211 + $0x80] sm:$0xf]
        %v304 = vld [vmem:[%s211 + $0x84] sm:$0xf]
        %v305 = vld [vmem:[%s211 + $0x88] sm:$0xf]
        %v306 = vld [vmem:[%s211 + $0x8c] sm:$0xf]
        %v307 = vld [vmem:[%s211 + $0x90] sm:$0xf]
        %v308 = vld [vmem:[%s211 + $0x94] sm:$0xf]
        %v309 = vld [vmem:[%s211 + $0x98] sm:$0xf]
        %v310 = vld [vmem:[%s211 + $0x9c] sm:$0xf]
        %v311 = vld [vmem:[%s211 + $0xa0] sm:$0xf]
        %v312 = vld [vmem:[%s211 + $0xa4] sm:$0xf]
        %v313 = vld [vmem:[%s211 + $0xa8] sm:$0xf]
        %v314 = vld [vmem:[%s211 + $0xac] sm:$0xf]
        %v315 = vld [vmem:[%s211 + $0xb0] sm:$0xf]
        %v316 = vld [vmem:[%s211 + $0xb4] sm:$0xf]
        %v317 = vld [vmem:[%s211 + $0xb8] sm:$0xf]
        %v318 = vld [vmem:[%s211 + $0xbc] sm:$0xf]
        %v319 = vld [vmem:[%s211 + $0xc0] sm:$0xf]
        %v320 = vld [vmem:[%s211 + $0xc4] sm:$0xf]
        %v321 = vld [vmem:[%s211 + $0xc8] sm:$0xf]
        %v322 = vld [vmem:[%s211 + $0xcc] sm:$0xf]
        %v323 = vld [vmem:[%s211 + $0xd0] sm:$0xf]
        %v324 = vld [vmem:[%s211 + $0xd4] sm:$0xf]
        %v325 = vld [vmem:[%s211 + $0xd8] sm:$0xf]
        %v326 = vld [vmem:[%s211 + $0xdc] sm:$0xf]
        %v327 = vld [vmem:[%s211 + $0xe0] sm:$0xf]
        %v328 = vld [vmem:[%s211 + $0xe4] sm:$0xf]
        %v329 = vld [vmem:[%s211 + $0xe8] sm:$0xf]
        %v330 = vld [vmem:[%s211 + $0xec] sm:$0xf]
        %v331 = vld [vmem:[%s211 + $0xf0] sm:$0xf]
        %v332 = vld [vmem:[%s211 + $0xf4] sm:$0xf]
        %v333 = vld [vmem:[%s211 + $0xf8] sm:$0xf]
        %v334 = vld [vmem:[%s211 + $0xfc] sm:$0xf]
        %v335 = vld [vmem:[%s256] sm:$0xf]
        %v336 = vld [vmem:[%s256 + $0x4] sm:$0xf]
        %v337 = vld [vmem:[%s256 + $0x8] sm:$0xf]
        %v338 = vld [vmem:[%s256 + $0xc] sm:$0xf]
        %v339 = vld [vmem:[%s256 + $0x10] sm:$0xf]
        %v340 = vld [vmem:[%s256 + $0x14] sm:$0xf]
        %v341 = vld [vmem:[%s256 + $0x18] sm:$0xf]
        %v342 = vld [vmem:[%s256 + $0x1c] sm:$0xf]
        %v343 = vld [vmem:[%s256 + $0x20] sm:$0xf]
        %v344 = vld [vmem:[%s256 + $0x24] sm:$0xf]
        %v345 = vld [vmem:[%s256 + $0x28] sm:$0xf]
        %v346 = vld [vmem:[%s256 + $0x2c] sm:$0xf]
        %v347 = vld [vmem:[%s256 + $0x30] sm:$0xf]
        %v348 = vld [vmem:[%s256 + $0x34] sm:$0xf]
        %v349 = vld [vmem:[%s256 + $0x38] sm:$0xf]
        %v350 = vld [vmem:[%s256 + $0x3c] sm:$0xf]
        %v351 = vld [vmem:[%s260] sm:$0x1]
        %v353 = vlaneseq
        %v354 = vshrl.u32 %v353, 7
        %v355 = vsub.s32 0, %v354
        %v356 = vrot.slane %v351, %v355
        %v422 = vunpack.c.l.b16 %v271
        %v423 = vunpack.c.l.b16 %v272
        %v424 = vunpack.c.l.b16 %v273
        %v425 = vunpack.c.l.b16 %v274
        %v426 = vunpack.c.l.b16 %v275
        %v427 = vunpack.c.l.b16 %v276
        %v428 = vunpack.c.l.b16 %v277
        %v429 = vunpack.c.l.b16 %v278
        %v430 = vunpack.c.l.b16 %v279
        %v431 = vunpack.c.l.b16 %v280
        %v432 = vunpack.c.l.b16 %v281
        %v433 = vunpack.c.l.b16 %v282
        %v434 = vunpack.c.l.b16 %v283
        %v435 = vunpack.c.l.b16 %v284
        %v436 = vunpack.c.l.b16 %v285
        %v437 = vunpack.c.l.b16 %v286
        %v438 = vunpack.c.l.b16 %v287
        %v439 = vunpack.c.l.b16 %v288
        %v440 = vunpack.c.l.b16 %v289
        %v441 = vunpack.c.l.b16 %v290
        %v442 = vunpack.c.l.b16 %v291
        %v443 = vunpack.c.l.b16 %v292
        %v444 = vunpack.c.l.b16 %v293
        %v445 = vunpack.c.l.b16 %v294
        %v446 = vunpack.c.l.b16 %v295
        %v447 = vunpack.c.l.b16 %v296
        %v448 = vunpack.c.l.b16 %v297
        %v449 = vunpack.c.l.b16 %v298
        %v450 = vunpack.c.l.b16 %v299
        %v451 = vunpack.c.l.b16 %v300
        %v452 = vunpack.c.l.b16 %v301
        %v453 = vunpack.c.l.b16 %v302
        %v454 = vunpack.c.l.b16 %v303
        %v455 = vunpack.c.l.b16 %v304
        %v456 = vunpack.c.l.b16 %v305
        %v457 = vunpack.c.l.b16 %v306
        %v458 = vunpack.c.l.b16 %v307
        %v459 = vunpack.c.l.b16 %v308
        %v460 = vunpack.c.l.b16 %v309
        %v461 = vunpack.c.l.b16 %v310
        %v462 = vunpack.c.l.b16 %v311
        %v463 = vunpack.c.l.b16 %v312
        %v464 = vunpack.c.l.b16 %v313
        %v465 = vunpack.c.l.b16 %v314
        %v466 = vunpack.c.l.b16 %v315
        %v467 = vunpack.c.l.b16 %v316
        %v468 = vunpack.c.l.b16 %v317
        %v469 = vunpack.c.l.b16 %v318
        %v470 = vunpack.c.l.b16 %v319
        %v471 = vunpack.c.l.b16 %v320
        %v472 = vunpack.c.l.b16 %v321
        %v473 = vunpack.c.l.b16 %v322
        %v474 = vunpack.c.l.b16 %v323
        %v475 = vunpack.c.l.b16 %v324
        %v476 = vunpack.c.l.b16 %v325
        %v477 = vunpack.c.l.b16 %v326
        %v478 = vunpack.c.l.b16 %v327
        %v479 = vunpack.c.l.b16 %v328
        %v480 = vunpack.c.l.b16 %v329
        %v481 = vunpack.c.l.b16 %v330
        %v482 = vunpack.c.l.b16 %v331
        %v483 = vunpack.c.l.b16 %v332
        %v484 = vunpack.c.l.b16 %v333
        %v485 = vunpack.c.l.b16 %v334
        %v486 = vpack.c.b16 %v423, %v422
        %v487 = vpack.c.b16 %v425, %v424
        %v488 = vpack.c.b16 %v427, %v426
        %v489 = vpack.c.b16 %v429, %v428
        %v490 = vpack.c.b16 %v431, %v430
        %v491 = vpack.c.b16 %v433, %v432
        %v492 = vpack.c.b16 %v435, %v434
        %v493 = vpack.c.b16 %v437, %v436
        %v494 = vpack.c.b16 %v439, %v438
        %v495 = vpack.c.b16 %v441, %v440
        %v496 = vpack.c.b16 %v443, %v442
        %v497 = vpack.c.b16 %v445, %v444
        %v498 = vpack.c.b16 %v447, %v446
        %v499 = vpack.c.b16 %v449, %v448
        %v500 = vpack.c.b16 %v451, %v450
        %v501 = vpack.c.b16 %v453, %v452
        %v502 = vpack.c.b16 %v455, %v454
        %v503 = vpack.c.b16 %v457, %v456
        %v504 = vpack.c.b16 %v459, %v458
        %v505 = vpack.c.b16 %v461, %v460
        %v506 = vpack.c.b16 %v463, %v462
        %v507 = vpack.c.b16 %v465, %v464
        %v508 = vpack.c.b16 %v467, %v466
        %v509 = vpack.c.b16 %v469, %v468
        %v510 = vpack.c.b16 %v471, %v470
        %v511 = vpack.c.b16 %v473, %v472
        %v512 = vpack.c.b16 %v475, %v474
        %v513 = vpack.c.b16 %v477, %v476
        %v514 = vpack.c.b16 %v479, %v478
        %v515 = vpack.c.b16 %v481, %v480
        %v516 = vpack.c.b16 %v483, %v482
        %v517 = vpack.c.b16 %v485, %v484
        %v566 = vunpack.c.l.b16 %v335
        %v567 = vunpack.c.l.b16 %v336
        %v568 = vunpack.c.l.b16 %v337
        %v569 = vunpack.c.l.b16 %v338
        %v570 = vunpack.c.l.b16 %v339
        %v571 = vunpack.c.l.b16 %v340
        %v572 = vunpack.c.l.b16 %v341
        %v573 = vunpack.c.l.b16 %v342
        %v574 = vunpack.c.l.b16 %v343
        %v575 = vunpack.c.l.b16 %v344
        %v576 = vunpack.c.l.b16 %v345
        %v577 = vunpack.c.l.b16 %v346
        %v578 = vunpack.c.l.b16 %v347
        %v579 = vunpack.c.l.b16 %v348
        %v580 = vunpack.c.l.b16 %v349
        %v581 = vunpack.c.l.b16 %v350
        %v582 = vpack.c.b16 %v567, %v566
        %v583 = vpack.c.b16 %v569, %v568
        %v584 = vpack.c.b16 %v571, %v570
        %v585 = vpack.c.b16 %v573, %v572
        %v586 = vpack.c.b16 %v575, %v574
        %v587 = vpack.c.b16 %v577, %v576
        %v588 = vpack.c.b16 %v579, %v578
        %v589 = vpack.c.b16 %v581, %v580
        %598 = vmatprep.subr.bf16.mxu0 0
        %599 = vmatpush1.bf16.msra.mxu0 %v582
        %600 = vmatprep.subr.bf16.mxu0 0
        %601 = vmatpush1.bf16.msra.mxu0 %v583
        %602 = vmatprep.subr.bf16.mxu0 0
        %603 = vmatpush1.bf16.msra.mxu0 %v584
        %604 = vmatprep.subr.bf16.mxu0 0
        %605 = vmatpush1.bf16.msra.mxu0 %v585
        %606 = vmatprep.subr.bf16.mxu0 0
        %607 = vmatpush1.bf16.msra.mxu0 %v586
        %608 = vmatprep.subr.bf16.mxu0 0
        %609 = vmatpush1.bf16.msra.mxu0 %v587
        %610 = vmatprep.subr.bf16.mxu0 0
        %611 = vmatpush1.bf16.msra.mxu0 %v588
        %612 = vmatprep.subr.bf16.mxu0 0
        %613 = vmatpush1.bf16.msra.mxu0 %v589
        %614 = vmatprep.subr.bf16.mxu0 0
        %615 = vmatpush1.bf16.msra.mxu0 0
        %616 = vmatprep.subr.bf16.mxu0 0
        %617 = vmatpush1.bf16.msra.mxu0 0
        %618 = vmatprep.subr.bf16.mxu0 0
        %619 = vmatpush1.bf16.msra.mxu0 0
        %620 = vmatprep.subr.bf16.mxu0 0
        %621 = vmatpush1.bf16.msra.mxu0 0
        %622 = vmatprep.subr.bf16.mxu0 0
        %623 = vmatpush1.bf16.msra.mxu0 0
        %624 = vmatprep.subr.bf16.mxu0 0
        %625 = vmatpush1.bf16.msra.mxu0 0
        %626 = vmatprep.subr.bf16.mxu0 0
        %627 = vmatpush1.bf16.msra.mxu0 0
        %628 = vmatprep.subr.bf16.mxu0 0
        %629 = vmatpush1.bf16.msra.mxu0 0
        %630 = vmatprep.mubr.bf16.mxu0 0
        %631 = vmatmul.mubr.bf16.gmra.mrb[0].mxu0 %v486
        %v632 = vpop.f32.mrb[0].mxu0
        %v633 = vadd.f32 %v356, %v632
        %v634 = vpop.f32.mrb[0].mxu0
        %v635 = vpop.f32.mrb[0].mxu0
        %v636 = vadd.f32 %v356, %v635
        %v637 = vpop.f32.mrb[0].mxu0
        %638 = vmatprep.mubr.bf16.mxu0 0
        %639 = vmatmul.mubr.bf16.gmra.mrb[0].mxu0 %v487
        %v640 = vpop.f32.mrb[0].mxu0
        %v641 = vadd.f32 %v356, %v640
        %v642 = vpop.f32.mrb[0].mxu0
        %v643 = vpop.f32.mrb[0].mxu0
        %v644 = vadd.f32 %v356, %v643
        %v645 = vpop.f32.mrb[0].mxu0
        %646 = vmatprep.mubr.bf16.mxu0 0
        %647 = vmatmul.mubr.bf16.gmra.mrb[0].mxu0 %v488
        %v648 = vpop.f32.mrb[0].mxu0
        %v649 = vadd.f32 %v356, %v648
        %v650 = vpop.f32.mrb[0].mxu0
        %v651 = vpop.f32.mrb[0].mxu0
        %v652 = vadd.f32 %v356, %v651
        %v653 = vpop.f32.mrb[0].mxu0
        %654 = vmatprep.mubr.bf16.mxu0 0
        %655 = vmatmul.mubr.bf16.gmra.mrb[0].mxu0 %v489
        %v656 = vpop.f32.mrb[0].mxu0
        %v657 = vadd.f32 %v356, %v656
        %v658 = vpop.f32.mrb[0].mxu0
        %v659 = vpop.f32.mrb[0].mxu0
        %v660 = vadd.f32 %v356, %v659
        %v661 = vpop.f32.mrb[0].mxu0
        %662 = vmatprep.mubr.bf16.mxu0 0
        %663 = vmatmul.mubr.bf16.gmra.mrb[0].mxu0 %v490
        %v664 = vpop.f32.mrb[0].mxu0
        %v665 = vadd.f32 %v356, %v664
        %v666 = vpop.f32.mrb[0].mxu0
        %v667 = vpop.f32.mrb[0].mxu0
        %v668 = vadd.f32 %v356, %v667
        %v669 = vpop.f32.mrb[0].mxu0
        %670 = vmatprep.mubr.bf16.mxu0 0
        %671 = vmatmul.mubr.bf16.gmra.mrb[0].mxu0 %v491
        %v672 = vpop.f32.mrb[0].mxu0
        %v673 = vadd.f32 %v356, %v672
        %v674 = vpop.f32.mrb[0].mxu0
        %v675 = vpop.f32.mrb[0].mxu0
        %v676 = vadd.f32 %v356, %v675
        %v677 = vpop.f32.mrb[0].mxu0
        %678 = vmatprep.mubr.bf16.mxu0 0
        %679 = vmatmul.mubr.bf16.gmra.mrb[0].mxu0 %v492
        %v680 = vpop.f32.mrb[0].mxu0
        %v681 = vadd.f32 %v356, %v680
        %v682 = vpop.f32.mrb[0].mxu0
        %v683 = vpop.f32.mrb[0].mxu0
        %v684 = vadd.f32 %v356, %v683
        %v685 = vpop.f32.mrb[0].mxu0
        %686 = vmatprep.mubr.bf16.mxu0 0
        %687 = vmatmul.mubr.bf16.gmra.mrb[0].mxu0 %v493
        %v688 = vpop.f32.mrb[0].mxu0
        %v689 = vadd.f32 %v356, %v688
        %v690 = vpop.f32.mrb[0].mxu0
        %v691 = vpop.f32.mrb[0].mxu0
        %v692 = vadd.f32 %v356, %v691
        %v693 = vpop.f32.mrb[0].mxu0
        %694 = vmatprep.mubr.bf16.mxu0 0
        %695 = vmatmul.mubr.bf16.gmra.mrb[0].mxu0 %v494
        %v696 = vpop.f32.mrb[0].mxu0
        %v697 = vadd.f32 %v356, %v696
        %v698 = vpop.f32.mrb[0].mxu0
        %v699 = vpop.f32.mrb[0].mxu0
        %v700 = vadd.f32 %v356, %v699
        %v701 = vpop.f32.mrb[0].mxu0
        %702 = vmatprep.mubr.bf16.mxu0 0
        %703 = vmatmul.mubr.bf16.gmra.mrb[0].mxu0 %v495
        %v704 = vpop.f32.mrb[0].mxu0
        %v705 = vadd.f32 %v356, %v704
        %v706 = vpop.f32.mrb[0].mxu0
        %v707 = vpop.f32.mrb[0].mxu0
        %v708 = vadd.f32 %v356, %v707
        %v709 = vpop.f32.mrb[0].mxu0
        %710 = vmatprep.mubr.bf16.mxu0 0
        %711 = vmatmul.mubr.bf16.gmra.mrb[0].mxu0 %v496
        %v712 = vpop.f32.mrb[0].mxu0
        %v713 = vadd.f32 %v356, %v712
        %v714 = vpop.f32.mrb[0].mxu0
        %v715 = vpop.f32.mrb[0].mxu0
        %v716 = vadd.f32 %v356, %v715
        %v717 = vpop.f32.mrb[0].mxu0
        %718 = vmatprep.mubr.bf16.mxu0 0
        %719 = vmatmul.mubr.bf16.gmra.mrb[0].mxu0 %v497
        %v720 = vpop.f32.mrb[0].mxu0
        %v721 = vadd.f32 %v356, %v720
        %v722 = vpop.f32.mrb[0].mxu0
        %v723 = vpop.f32.mrb[0].mxu0
        %v724 = vadd.f32 %v356, %v723
        %v725 = vpop.f32.mrb[0].mxu0
        %726 = vmatprep.mubr.bf16.mxu0 0
        %727 = vmatmul.mubr.bf16.gmra.mrb[0].mxu0 %v498
        %v728 = vpop.f32.mrb[0].mxu0
        %v729 = vadd.f32 %v356, %v728
        %v730 = vpop.f32.mrb[0].mxu0
        %v731 = vpop.f32.mrb[0].mxu0
        %v732 = vadd.f32 %v356, %v731
        %v733 = vpop.f32.mrb[0].mxu0
        %734 = vmatprep.mubr.bf16.mxu0 0
        %735 = vmatmul.mubr.bf16.gmra.mrb[0].mxu0 %v499
        %v736 = vpop.f32.mrb[0].mxu0
        %v737 = vadd.f32 %v356, %v736
        %v738 = vpop.f32.mrb[0].mxu0
        %v739 = vpop.f32.mrb[0].mxu0
        %v740 = vadd.f32 %v356, %v739
        %v741 = vpop.f32.mrb[0].mxu0
        %742 = vmatprep.mubr.bf16.mxu0 0
        %743 = vmatmul.mubr.bf16.gmra.mrb[0].mxu0 %v500
        %v744 = vpop.f32.mrb[0].mxu0
        %v745 = vadd.f32 %v356, %v744
        %v746 = vpop.f32.mrb[0].mxu0
        %v747 = vpop.f32.mrb[0].mxu0
        %v748 = vadd.f32 %v356, %v747
        %v749 = vpop.f32.mrb[0].mxu0
        %750 = vmatprep.mubr.bf16.mxu0 0
        %751 = vmatmul.mubr.bf16.gmra.mrb[0].mxu0 %v501
        %v752 = vpop.f32.mrb[0].mxu0
        %v753 = vadd.f32 %v356, %v752
        %v754 = vpop.f32.mrb[0].mxu0
        %v755 = vpop.f32.mrb[0].mxu0
        %v756 = vadd.f32 %v356, %v755
        %v757 = vpop.f32.mrb[0].mxu0
        %758 = vmatprep.mubr.bf16.mxu0 0
        %759 = vmatmul.mubr.bf16.gmra.mrb[0].mxu0 %v502
        %v760 = vpop.f32.mrb[0].mxu0
        %v761 = vadd.f32 %v356, %v760
        %v762 = vpop.f32.mrb[0].mxu0
        %v763 = vpop.f32.mrb[0].mxu0
        %v764 = vadd.f32 %v356, %v763
        %v765 = vpop.f32.mrb[0].mxu0
        %766 = vmatprep.mubr.bf16.mxu0 0
        %767 = vmatmul.mubr.bf16.gmra.mrb[0].mxu0 %v503
        %v768 = vpop.f32.mrb[0].mxu0
        %v769 = vadd.f32 %v356, %v768
        %v770 = vpop.f32.mrb[0].mxu0
        %v771 = vpop.f32.mrb[0].mxu0
        %v772 = vadd.f32 %v356, %v771
        %v773 = vpop.f32.mrb[0].mxu0
        %774 = vmatprep.mubr.bf16.mxu0 0
        %775 = vmatmul.mubr.bf16.gmra.mrb[0].mxu0 %v504
        %v776 = vpop.f32.mrb[0].mxu0
        %v777 = vadd.f32 %v356, %v776
        %v778 = vpop.f32.mrb[0].mxu0
        %v779 = vpop.f32.mrb[0].mxu0
        %v780 = vadd.f32 %v356, %v779
        %v781 = vpop.f32.mrb[0].mxu0
        %782 = vmatprep.mubr.bf16.mxu0 0
        %783 = vmatmul.mubr.bf16.gmra.mrb[0].mxu0 %v505
        %v784 = vpop.f32.mrb[0].mxu0
        %v785 = vadd.f32 %v356, %v784
        %v786 = vpop.f32.mrb[0].mxu0
        %v787 = vpop.f32.mrb[0].mxu0
        %v788 = vadd.f32 %v356, %v787
        %v789 = vpop.f32.mrb[0].mxu0
        %790 = vmatprep.mubr.bf16.mxu0 0
        %791 = vmatmul.mubr.bf16.gmra.mrb[0].mxu0 %v506
        %v792 = vpop.f32.mrb[0].mxu0
        %v793 = vadd.f32 %v356, %v792
        %v794 = vpop.f32.mrb[0].mxu0
        %v795 = vpop.f32.mrb[0].mxu0
        %v796 = vadd.f32 %v356, %v795
        %v797 = vpop.f32.mrb[0].mxu0
        %798 = vmatprep.mubr.bf16.mxu0 0
        %799 = vmatmul.mubr.bf16.gmra.mrb[0].mxu0 %v507
        %v800 = vpop.f32.mrb[0].mxu0
        %v801 = vadd.f32 %v356, %v800
        %v802 = vpop.f32.mrb[0].mxu0
        %v803 = vpop.f32.mrb[0].mxu0
        %v804 = vadd.f32 %v356, %v803
        %v805 = vpop.f32.mrb[0].mxu0
        %806 = vmatprep.mubr.bf16.mxu0 0
        %807 = vmatmul.mubr.bf16.gmra.mrb[0].mxu0 %v508
        %v808 = vpop.f32.mrb[0].mxu0
        %v809 = vadd.f32 %v356, %v808
        %v810 = vpop.f32.mrb[0].mxu0
        %v811 = vpop.f32.mrb[0].mxu0
        %v812 = vadd.f32 %v356, %v811
        %v813 = vpop.f32.mrb[0].mxu0
        %814 = vmatprep.mubr.bf16.mxu0 0
        %815 = vmatmul.mubr.bf16.gmra.mrb[0].mxu0 %v509
        %v816 = vpop.f32.mrb[0].mxu0
        %v817 = vadd.f32 %v356, %v816
        %v818 = vpop.f32.mrb[0].mxu0
        %v819 = vpop.f32.mrb[0].mxu0
        %v820 = vadd.f32 %v356, %v819
        %v821 = vpop.f32.mrb[0].mxu0
        %822 = vmatprep.mubr.bf16.mxu0 0
        %823 = vmatmul.mubr.bf16.gmra.mrb[0].mxu0 %v510
        %v824 = vpop.f32.mrb[0].mxu0
        %v825 = vadd.f32 %v356, %v824
        %v826 = vpop.f32.mrb[0].mxu0
        %v827 = vpop.f32.mrb[0].mxu0
        %v828 = vadd.f32 %v356, %v827
        %v829 = vpop.f32.mrb[0].mxu0
        %830 = vmatprep.mubr.bf16.mxu0 0
        %831 = vmatmul.mubr.bf16.gmra.mrb[0].mxu0 %v511
        %v832 = vpop.f32.mrb[0].mxu0
        %v833 = vadd.f32 %v356, %v832
        %v834 = vpop.f32.mrb[0].mxu0
        %v835 = vpop.f32.mrb[0].mxu0
        %v836 = vadd.f32 %v356, %v835
        %v837 = vpop.f32.mrb[0].mxu0
        %838 = vmatprep.mubr.bf16.mxu0 0
        %839 = vmatmul.mubr.bf16.gmra.mrb[0].mxu0 %v512
        %v840 = vpop.f32.mrb[0].mxu0
        %v841 = vadd.f32 %v356, %v840
        %v842 = vpop.f32.mrb[0].mxu0
        %v843 = vpop.f32.mrb[0].mxu0
        %v844 = vadd.f32 %v356, %v843
        %v845 = vpop.f32.mrb[0].mxu0
        %846 = vmatprep.mubr.bf16.mxu0 0
        %847 = vmatmul.mubr.bf16.gmra.mrb[0].mxu0 %v513
        %v848 = vpop.f32.mrb[0].mxu0
        %v849 = vadd.f32 %v356, %v848
        %v850 = vpop.f32.mrb[0].mxu0
        %v851 = vpop.f32.mrb[0].mxu0
        %v852 = vadd.f32 %v356, %v851
        %v853 = vpop.f32.mrb[0].mxu0
        %854 = vmatprep.mubr.bf16.mxu0 0
        %855 = vmatmul.mubr.bf16.gmra.mrb[0].mxu0 %v514
        %v856 = vpop.f32.mrb[0].mxu0
        %v857 = vadd.f32 %v356, %v856
        %v858 = vpop.f32.mrb[0].mxu0
        %v859 = vpop.f32.mrb[0].mxu0
        %v860 = vadd.f32 %v356, %v859
        %v861 = vpop.f32.mrb[0].mxu0
        %862 = vmatprep.mubr.bf16.mxu0 0
        %863 = vmatmul.mubr.bf16.gmra.mrb[0].mxu0 %v515
        %v864 = vpop.f32.mrb[0].mxu0
        %v865 = vadd.f32 %v356, %v864
        %v866 = vpop.f32.mrb[0].mxu0
        %v867 = vpop.f32.mrb[0].mxu0
        %v868 = vadd.f32 %v356, %v867
        %v869 = vpop.f32.mrb[0].mxu0
        %870 = vmatprep.mubr.bf16.mxu0 0
        %871 = vmatmul.mubr.bf16.gmra.mrb[0].mxu0 %v516
        %v872 = vpop.f32.mrb[0].mxu0
        %v873 = vadd.f32 %v356, %v872
        %v874 = vpop.f32.mrb[0].mxu0
        %v875 = vpop.f32.mrb[0].mxu0
        %v876 = vadd.f32 %v356, %v875
        %v877 = vpop.f32.mrb[0].mxu0
        %878 = vmatprep.mubr.bf16.mxu0 0
        %879 = vmatmul.mubr.bf16.gmra.mrb[0].mxu0 %v517
        %v880 = vpop.f32.mrb[0].mxu0
        %v881 = vadd.f32 %v356, %v880
        %v882 = vpop.f32.mrb[0].mxu0
        %v883 = vpop.f32.mrb[0].mxu0
        %v884 = vadd.f32 %v356, %v883
        %v885 = vpop.f32.mrb[0].mxu0
        %886 = vdwg.mxu0
        %v887 = vmax.f32 %v633, 0.0
        %v888 = vmax.f32 %v636, 0.0
        %v889 = vmax.f32 %v641, 0.0
        %v890 = vmax.f32 %v644, 0.0
        %v891 = vmax.f32 %v649, 0.0
        %v892 = vmax.f32 %v652, 0.0
        %v893 = vmax.f32 %v657, 0.0
        %v894 = vmax.f32 %v660, 0.0
        %v895 = vmax.f32 %v665, 0.0
        %v896 = vmax.f32 %v668, 0.0
        %v897 = vmax.f32 %v673, 0.0
        %v898 = vmax.f32 %v676, 0.0
        %v899 = vmax.f32 %v681, 0.0
        %v900 = vmax.f32 %v684, 0.0
        %v901 = vmax.f32 %v689, 0.0
        %v902 = vmax.f32 %v692, 0.0
        %v903 = vmax.f32 %v697, 0.0
        %v904 = vmax.f32 %v700, 0.0
        %v905 = vmax.f32 %v705, 0.0
        %v906 = vmax.f32 %v708, 0.0
        %v907 = vmax.f32 %v713, 0.0
        %v908 = vmax.f32 %v716, 0.0
        %v909 = vmax.f32 %v721, 0.0
        %v910 = vmax.f32 %v724, 0.0
        %v911 = vmax.f32 %v729, 0.0
        %v912 = vmax.f32 %v732, 0.0
        %v913 = vmax.f32 %v737, 0.0
        %v914 = vmax.f32 %v740, 0.0
        %v915 = vmax.f32 %v745, 0.0
        %v916 = vmax.f32 %v748, 0.0
        %v917 = vmax.f32 %v753, 0.0
        %v918 = vmax.f32 %v756, 0.0
        %v919 = vmax.f32 %v761, 0.0
        %v920 = vmax.f32 %v764, 0.0
        %v921 = vmax.f32 %v769, 0.0
        %v922 = vmax.f32 %v772, 0.0
        %v923 = vmax.f32 %v777, 0.0
        %v924 = vmax.f32 %v780, 0.0
        %v925 = vmax.f32 %v785, 0.0
        %v926 = vmax.f32 %v788, 0.0
        %v927 = vmax.f32 %v793, 0.0
        %v928 = vmax.f32 %v796, 0.0
        %v929 = vmax.f32 %v801, 0.0
        %v930 = vmax.f32 %v804, 0.0
        %v931 = vmax.f32 %v809, 0.0
        %v932 = vmax.f32 %v812, 0.0
        %v933 = vmax.f32 %v817, 0.0
        %v934 = vmax.f32 %v820, 0.0
        %v935 = vmax.f32 %v825, 0.0
        %v936 = vmax.f32 %v828, 0.0
        %v937 = vmax.f32 %v833, 0.0
        %v938 = vmax.f32 %v836, 0.0
        %v939 = vmax.f32 %v841, 0.0
        %v940 = vmax.f32 %v844, 0.0
        %v941 = vmax.f32 %v849, 0.0
        %v942 = vmax.f32 %v852, 0.0
        %v943 = vmax.f32 %v857, 0.0
        %v944 = vmax.f32 %v860, 0.0
        %v945 = vmax.f32 %v865, 0.0
        %v946 = vmax.f32 %v868, 0.0
        %v947 = vmax.f32 %v873, 0.0
        %v948 = vmax.f32 %v876, 0.0
        %v949 = vmax.f32 %v881, 0.0
        %v950 = vmax.f32 %v884, 0.0
        %vm951 = vcmask 523264
        %952 = vst.msk [vmem:[%s268] sm:$0xff] %vm951, %v887
        %953 = vst.msk [vmem:[%s268 + $0x8] sm:$0xff] %vm951, %v888
        %954 = vst.msk [vmem:[%s268 + $0x10] sm:$0xff] %vm951, %v889
        %955 = vst.msk [vmem:[%s268 + $0x18] sm:$0xff] %vm951, %v890
        %956 = vst.msk [vmem:[%s268 + $0x20] sm:$0xff] %vm951, %v891
        %957 = vst.msk [vmem:[%s268 + $0x28] sm:$0xff] %vm951, %v892
        %958 = vst.msk [vmem:[%s268 + $0x30] sm:$0xff] %vm951, %v893
        %959 = vst.msk [vmem:[%s268 + $0x38] sm:$0xff] %vm951, %v894
        %960 = vst.msk [vmem:[%s268 + $0x40] sm:$0xff] %vm951, %v895
        %961 = vst.msk [vmem:[%s268 + $0x48] sm:$0xff] %vm951, %v896
        %962 = vst.msk [vmem:[%s268 + $0x50] sm:$0xff] %vm951, %v897
        %963 = vst.msk [vmem:[%s268 + $0x58] sm:$0xff] %vm951, %v898
        %964 = vst.msk [vmem:[%s268 + $0x60] sm:$0xff] %vm951, %v899
        %965 = vst.msk [vmem:[%s268 + $0x68] sm:$0xff] %vm951, %v900
        %966 = vst.msk [vmem:[%s268 + $0x70] sm:$0xff] %vm951, %v901
        %967 = vst.msk [vmem:[%s268 + $0x78] sm:$0xff] %vm951, %v902
        %968 = vst.msk [vmem:[%s268 + $0x80] sm:$0xff] %vm951, %v903
        %969 = vst.msk [vmem:[%s268 + $0x88] sm:$0xff] %vm951, %v904
        %970 = vst.msk [vmem:[%s268 + $0x90] sm:$0xff] %vm951, %v905
        %971 = vst.msk [vmem:[%s268 + $0x98] sm:$0xff] %vm951, %v906
        %972 = vst.msk [vmem:[%s268 + $0xa0] sm:$0xff] %vm951, %v907
        %973 = vst.msk [vmem:[%s268 + $0xa8] sm:$0xff] %vm951, %v908
        %974 = vst.msk [vmem:[%s268 + $0xb0] sm:$0xff] %vm951, %v909
        %975 = vst.msk [vmem:[%s268 + $0xb8] sm:$0xff] %vm951, %v910
        %976 = vst.msk [vmem:[%s268 + $0xc0] sm:$0xff] %vm951, %v911
        %977 = vst.msk [vmem:[%s268 + $0xc8] sm:$0xff] %vm951, %v912
        %978 = vst.msk [vmem:[%s268 + $0xd0] sm:$0xff] %vm951, %v913
        %979 = vst.msk [vmem:[%s268 + $0xd8] sm:$0xff] %vm951, %v914
        %980 = vst.msk [vmem:[%s268 + $0xe0] sm:$0xff] %vm951, %v915
        %981 = vst.msk [vmem:[%s268 + $0xe8] sm:$0xff] %vm951, %v916
        %982 = vst.msk [vmem:[%s268 + $0xf0] sm:$0xff] %vm951, %v917
        %983 = vst.msk [vmem:[%s268 + $0xf8] sm:$0xff] %vm951, %v918
        %984 = vst.msk [vmem:[%s268 + $0x100] sm:$0xff] %vm951, %v919
        %985 = vst.msk [vmem:[%s268 + $0x108] sm:$0xff] %vm951, %v920
        %986 = vst.msk [vmem:[%s268 + $0x110] sm:$0xff] %vm951, %v921
        %987 = vst.msk [vmem:[%s268 + $0x118] sm:$0xff] %vm951, %v922
        %988 = vst.msk [vmem:[%s268 + $0x120] sm:$0xff] %vm951, %v923
        %989 = vst.msk [vmem:[%s268 + $0x128] sm:$0xff] %vm951, %v924
        %990 = vst.msk [vmem:[%s268 + $0x130] sm:$0xff] %vm951, %v925
        %991 = vst.msk [vmem:[%s268 + $0x138] sm:$0xff] %vm951, %v926
        %992 = vst.msk [vmem:[%s268 + $0x140] sm:$0xff] %vm951, %v927
        %993 = vst.msk [vmem:[%s268 + $0x148] sm:$0xff] %vm951, %v928
        %994 = vst.msk [vmem:[%s268 + $0x150] sm:$0xff] %vm951, %v929
        %995 = vst.msk [vmem:[%s268 + $0x158] sm:$0xff] %vm951, %v930
        %996 = vst.msk [vmem:[%s268 + $0x160] sm:$0xff] %vm951, %v931
        %997 = vst.msk [vmem:[%s268 + $0x168] sm:$0xff] %vm951, %v932
        %998 = vst.msk [vmem:[%s268 + $0x170] sm:$0xff] %vm951, %v933
        %999 = vst.msk [vmem:[%s268 + $0x178] sm:$0xff] %vm951, %v934
        %1000 = vst.msk [vmem:[%s268 + $0x180] sm:$0xff] %vm951, %v935
        %1001 = vst.msk [vmem:[%s268 + $0x188] sm:$0xff] %vm951, %v936
        %1002 = vst.msk [vmem:[%s268 + $0x190] sm:$0xff] %vm951, %v937
        %1003 = vst.msk [vmem:[%s268 + $0x198] sm:$0xff] %vm951, %v938
        %1004 = vst.msk [vmem:[%s268 + $0x1a0] sm:$0xff] %vm951, %v939
        %1005 = vst.msk [vmem:[%s268 + $0x1a8] sm:$0xff] %vm951, %v940
        %1006 = vst.msk [vmem:[%s268 + $0x1b0] sm:$0xff] %vm951, %v941
        %1007 = vst.msk [vmem:[%s268 + $0x1b8] sm:$0xff] %vm951, %v942
        %1008 = vst.msk [vmem:[%s268 + $0x1c0] sm:$0xff] %vm951, %v943
        %1009 = vst.msk [vmem:[%s268 + $0x1c8] sm:$0xff] %vm951, %v944
        %1010 = vst.msk [vmem:[%s268 + $0x1d0] sm:$0xff] %vm951, %v945
        %1011 = vst.msk [vmem:[%s268 + $0x1d8] sm:$0xff] %vm951, %v946
        %1012 = vst.msk [vmem:[%s268 + $0x1e0] sm:$0xff] %vm951, %v947
        %1013 = vst.msk [vmem:[%s268 + $0x1e8] sm:$0xff] %vm951, %v948
        %1014 = vst.msk [vmem:[%s268 + $0x1f0] sm:$0xff] %vm951, %v949
        %1015 = vst.msk [vmem:[%s268 + $0x1f8] sm:$0xff] %vm951, %v950
        %s1016 = smul.u32 64, %s22
        %p1017 = scmp.lt.s32.totalorder %s1016, 127
        %s1018 = scalar_select %p1017, %s1016, 127
        %p1019 = scmp.lt.s32.totalorder %s23, 0
        %s1020 = scalar_select %p1019, %s23, 0
        %s1021 = sadd.s32 %s1020, %s1018
        %s1022 = smul.addr %s1021, 8
        %s1023 = scalar_lea.vmem %s3, %s1022
        // Predicated region
        $region37: #{tpu_custom_call.1} parent=31 // pred_check
          %p1024 = pneg %p138
        $region38: #{tpu_custom_call.1} parent=31 // pred_check_branch
          %1026 = sbr.rel (%p1024) target = $region40
        $region39: #{tpu_custom_call.1} parent=31 // pred_region
          %s1027 = smul.u32 64, %s22
        $region40: #{tpu_custom_call.1} parent=31 // pred_fallthru
          _
      $region32: #{tpu_custom_call.1} parent=5 // pred_fallthru
        _
      %p1028 = scmp.le.s32.totalorder 2, %s12
      // Predicated region
      $region41: #{tpu_custom_call.1} parent=5 // pred_check
        %p1029 = pneg %p1028
      $region42: #{tpu_custom_call.1} parent=5 // pred_check_branch
        %1031 = sbr.rel (%p1029) target = $region44
      $region43: #{tpu_custom_call.1} parent=5 // pred_region
        %s1032 = ssub.s32 %s12, 2
        // Predicated region
        $region45: #{tpu_custom_call.1} parent=43 // pred_check
          %p1033 = pneg %p144
        $region46: #{tpu_custom_call.1} parent=43 // pred_check_branch
          %1035 = sbr.rel (%p1033) target = $region48
        $region47: #{tpu_custom_call.1} parent=43 // pred_region
          %s1036 = smul.u32 64, %s25
          %p1037 = scmp.lt.s32.totalorder %s1036, 127
          %s1038 = scalar_select %p1037, %s1036, 127
          %p1039 = scmp.lt.s32.totalorder %s26, 0
          %s1040 = scalar_select %p1039, %s26, 0
          %s1041 = sadd.s32 %s1040, %s1038
          %s1042 = smul.addr %s1041, 8
          %s1043 = scalar_lea.vmem %s3, %s1042
        $region48: #{tpu_custom_call.1} parent=43 // pred_fallthru
          _
      $region44: #{tpu_custom_call.1} parent=5 // pred_fallthru
        _
    $region6: #{tpu_custom_call.1} parent=1 // loop_footer
      %s16 = sadd.s32 1, %s12
    $region7: #{tpu_custom_call.1} parent=1 // loop_footer_branch
      %11 = sbr.rel target = $region3
    $region8: #{tpu_custom_call.1} parent=1 // loop_exit
      _
    %1044 = vsyncpa [#allocation3], 1
    %s1045 = scalar_lea.sflag [#allocation3], 1
    %1046 = vsyncpa %s1045, 1

</llo_original>
